<compile_context>
chip_gen: v6e
topology: v6e:2x2x1
jax: 0.10.0
libtpu: 0.0.40
codegen_flags: <defaults>
</compile_context>

<pallas_src>
import numpy as np

import jax
import jax.numpy as jnp
from jax.experimental import pallas as pl
from jax.experimental.pallas import tpu as pltpu


_SUBLANE = 8    # native tile, second-to-last dim
_LANE = 128     # native tile, last dim

# Per-buffer budget for the gridless "whole slab in VMEM" fast path.  Kept
# small so (input + output) stays far below the tightest default scoped-VMEM
# limit across generations (v5e: 16 MiB scoped, v7x: 64 MiB physical).
_GRIDLESS_BYTES_PER_BUFFER = 2 * 1024 * 1024

# Tiled fallback: (512, 1024) f32 blocks = 2 MiB/block; in + out, each
# double-buffered = 8 MiB working set, well inside every generation's budget.
_TILE_M = 512
_TILE_N = 1024
_VMEM_LIMIT_BYTES = 32 * 1024 * 1024


def _round_up(v, m):
    return (v + m - 1) // m * m


def _scale_kernel(x_ref, o_ref):
    # Elementwise hot path: o = 10 * x  (one VPU multiply per vreg).
    o_ref[...] = x_ref[...] * jnp.asarray(10, x_ref.dtype)


def _scale_by_10(xp):
    """10 * xp for an operand already padded to (8, 128)-aligned dims."""
    bp, npad = xp.shape
    nbytes = bp * npad * xp.dtype.itemsize
    cost = pl.CostEstimate(flops=bp * npad, transcendentals=0,
                           bytes_accessed=2 * nbytes)

    if nbytes <= _GRIDLESS_BYTES_PER_BUFFER:
        # Gridless: whole slab in VMEM, no software-pipeline prologue/epilogue.
        # Output aliases the (padded, intermediate) input HBM buffer.
        return pl.pallas_call(
            _scale_kernel,
            out_shape=jax.ShapeDtypeStruct(xp.shape, xp.dtype),
            in_specs=[pl.BlockSpec(memory_space=pltpu.MemorySpace.VMEM)],
            out_specs=pl.BlockSpec(memory_space=pltpu.MemorySpace.VMEM),
            input_output_aliases={0: 0},
            cost_estimate=cost,
        )(xp)

    # Tiled fallback for large inputs (memory-bound elementwise op).
    tm = min(bp, _TILE_M)
    tn = min(npad, _TILE_N)
    grid = (bp // tm, npad // tn)
    return pl.pallas_call(
        _scale_kernel,
        out_shape=jax.ShapeDtypeStruct(xp.shape, xp.dtype),
        grid=grid,
        in_specs=[pl.BlockSpec((tm, tn), lambda i, j: (i, j))],
        out_specs=pl.BlockSpec((tm, tn), lambda i, j: (i, j)),
        input_output_aliases={0: 0},
        cost_estimate=cost,
        compiler_params=pltpu.CompilerParams(
            # Both axes independent; "parallel" shards the loop across v7x's
            # two TensorCores (no-op on single-TC v5e/v6e, safe to set always).
            dimension_semantics=("parallel", "parallel"),
            vmem_limit_bytes=_VMEM_LIMIT_BYTES,
        ),
    )(xp)


@jax.jit
def _forward_dense(x):
    """flatten(x, 1) then 10*x, returned as ONE dense lane-ordered (B, N)."""
    b = x.shape[0]
    x2 = x.reshape(b, -1)                 # torch.flatten(x, 1)
    n = x2.shape[1]

    # Pad to the native (8, 128) tile (and, for the tiled path, to tile
    # multiples) so the kernel sees only unmasked, lane-dense vregs.
    bp = _round_up(max(b, 1), _SUBLANE)
    npad = _round_up(max(n, 1), _LANE)
    if bp * npad * x2.dtype.itemsize > _GRIDLESS_BYTES_PER_BUFFER:
        bp = _round_up(bp, min(bp, _TILE_M))
        npad = _round_up(npad, min(npad, _TILE_N))
    xp = jnp.pad(x2, ((0, bp - b), (0, npad - n)))

    scaled = _scale_by_10(xp)
    return scaled[:b, :n]


def model_forward(x):
    """Reproduces Model.forward.

    The dense scaled slab is computed in a single jitted dispatch; the split
    along dim=1 is done on the host as zero-copy NumPy views, avoiding 9
    masked sub-tile device outputs.
    """
    dense = jax.block_until_ready(_forward_dense(x))
    dense_np = np.asarray(dense)          # one device->host transfer
    n = dense_np.shape[1]
    # TODO(synk): torch.split(x, [1], dim=1) is invalid in PyTorch for a
    # size-9 dim (sizes must sum to 9); implemented as split into size-1
    # sections, yielding n chunks of shape (B, 1).
    return tuple(dense_np[:, j:j + 1] for j in range(n))


if __name__ == "__main__":
    key = jax.random.PRNGKey(0)
    x = jax.random.normal(key, (2, 9), dtype=jnp.float32)

    out = model_forward(x)
    out = jax.block_until_ready(out)

    # Sanity checks against the reference semantics.
    ref = np.asarray(10.0 * x.reshape(2, -1))
    assert len(out) == 9
    for j, chunk in enumerate(out):
        assert chunk.shape == (2, 1)
        assert np.allclose(chunk, ref[:, j:j + 1], rtol=1e-6, atol=1e-6)

    print("KERNEL_OK")
</pallas_src>

<mosaic_0001>
module attributes {stable_mosaic.version = 11 : i64} {
  func.func @_scale_kernel(%arg0: memref<8x128xf32, #tpu.memory_space<vmem>>, %arg1: memref<8x128xf32, #tpu.memory_space<vmem>>) attributes {dimension_semantics = [], scalar_prefetch = 0 : i64, scratch_operands = 0 : i64, tpu.core_type = #tpu.core_type<tc>} {
    %c0 = arith.constant 0 : index
    %c0_0 = arith.constant 0 : index
    %0 = vector.load %arg0[%c0, %c0_0] : memref<8x128xf32, #tpu.memory_space<vmem>>, vector<8x128xf32>
    %cst = arith.constant 1.000000e+01 : f32
    %1 = vector.broadcast %cst : f32 to vector<8x128xf32>
    %2 = arith.mulf %0, %1 : vector<8x128xf32>
    %c0_1 = arith.constant 0 : index
    %c0_2 = arith.constant 0 : index
    %3 = vector.load %arg1[%c0_1, %c0_2] : memref<8x128xf32, #tpu.memory_space<vmem>>, vector<8x128xf32>
    tpu.vector_store %arg1[%c0_1, %c0_2], %2 {strides = array<i32>} : memref<8x128xf32, #tpu.memory_space<vmem>>, vector<8x128xf32>,
    return
  }
}

</mosaic_0001>

<llo_original>
// kernel: _forward_dense.1
$region0: #{_forward_dense.1}
  #allocation0 [shape = 'u32[]', space=smem, size = 0x4, offset = 0x4, fixed_abs, tag = 'smem constant byte address 0x4 - core index']
  #allocation1 [shape = 'u32[144,128]{1,0:T(1,128)}', space=vmem, size = 0x12000, scoped, tag = 'internal scratch']
  %s0 = inlined_call_operand.vmem [shape: f32[8,128], index: 0, kind: input, shape index: {}, may-alias: {0,1}]
  %s1 = inlined_call_operand.vmem [shape: f32[8,128], index: 1, kind: output, shape index: {}, may-alias: {0,1}]
  %s2 = sld [smem:[#allocation0]]
  $region14: #{_forward_dense.1} parent=0
    _
  %s4 = ssub.s32 1, %s2
  %s5 = scalar_select 0, %s4, %s2
  // Predicated region
  $region2: #{_forward_dense.1} parent=0 // pred_check
    _
  $region3: #{_forward_dense.1} parent=0 // pred_check_branch
    %7 = sbr.rel (0) target = $region5
  $region4: #{_forward_dense.1} parent=0 // pred_region
    _
  $region5: #{_forward_dense.1} parent=0 // pred_fallthru
    _
  %v8 = vld [vmem:[%s0] sm:$0xff]
  %v9 = vmul.f32 %v8, 10.0
  %10 = vst [vmem:[%s1] sm:$0xff] %v9
  // Predicated region
  $region6: #{_forward_dense.1} parent=0 // pred_check
    _
  $region7: #{_forward_dense.1} parent=0 // pred_check_branch
    %12 = sbr.rel (0) target = $region9
  $region8: #{_forward_dense.1} parent=0 // pred_region
    _
  $region9: #{_forward_dense.1} parent=0 // pred_fallthru
    _
  // Predicated region
  $region10: #{_forward_dense.1} parent=0 // pred_check
    _
  $region11: #{_forward_dense.1} parent=0 // pred_check_branch
    %14 = sbr.rel (0) target = $region13
  $region12: #{_forward_dense.1} parent=0 // pred_region
    _
  $region13: #{_forward_dense.1} parent=0 // pred_fallthru
    _

</llo_original>
